<compile_context>
chip_gen: v5e
topology: v5e:2x2
jax: 0.10.0
libtpu: 0.0.40
codegen_flags: <defaults>
</compile_context>

<pallas_src>
import jax
import jax.numpy as jnp
from jax.experimental import pallas as pl
from jax.experimental.pallas import tpu as pltpu


def _round_up(x, m):
    return (x + m - 1) // m * m


def _choose_tile_b(bp, tile_b):
    """Pick the batch tile.  bp is already a multiple of 8."""
    if bp <= tile_b:
        tb = bp
    else:
        n_tiles = pl.cdiv(bp, tile_b)
        tb = _round_up(pl.cdiv(bp, n_tiles), 128)
    # Give the two v7x TensorCores at least one tile each once the batch is
    # large enough; on 1-TC chips the extra grid step costs only ~0.35 us.
    if bp >= 512:
        tb = min(tb, _round_up(pl.cdiv(bp, 2), 256))
    return max(tb, 8)


def critic_kernel(xa_ref, wf_ref, w2_ref, wo_ref, bo_ref, out_ref):
    f32 = jnp.float32
    bf16 = jnp.bfloat16

    h1_dim = w2_ref.shape[0]                     # 400
    h2_dim = w2_ref.shape[1]                     # 300
    act_off = wf_ref.shape[1] - h2_dim           # 512 (128-lane aligned)

    # Fused first pass: fc1 + fc2_action + (b1, b2+ba) in one MXU matmul.
    #   [TB, S+A+1] (bf16) @ [S+A+1, 812] (bf16) -> f32 accumulation.
    y = jnp.dot(xa_ref[...].astype(bf16), wf_ref[...],
                preferred_element_type=f32)

    h1 = jnp.maximum(y[:, :h1_dim], 0.0)         # fc1 + bias + ReLU
    act_b = y[:, act_off:]                       # fc2_action(a) + b2 + ba

    # fc2 (the only large matmul) + fused action/bias term, then ReLU.
    net = jnp.dot(h1.astype(bf16), w2_ref[...],
                  preferred_element_type=f32) + act_b
    net = jnp.maximum(net, 0.0)

    # Output layer as VPU multiply + XLU lane reduction -> naturally [TB, 1].
    wo = wo_ref[...].astype(f32)                 # [1, 300]
    value = jnp.sum(net * wo, axis=-1, keepdims=True) + bo_ref[0]
    out_ref[...] = value.astype(out_ref.dtype)


def critic_forward(states, actions, params, *, tile_b=1024):
    """Fused Critic forward.  `params` comes from prepare_params()."""
    B, S = states.shape
    A = actions.shape[1]
    K = S + A + 1

    # Build the fused [states | actions | 1] input once in the wrapper (tiny:
    # K f32 columns).  Only pad rows up to the next multiple of 8 (sublane);
    # partial last tiles are handled by Pallas edge masking.
    ones = jnp.ones((B, 1), states.dtype)
    xa = jnp.concatenate([states, actions, ones], axis=1)
    Bp = _round_up(B, 8)
    if Bp != B:
        xa = jnp.pad(xa, ((0, Bp - B), (0, 0)))

    tb = _choose_tile_b(Bp, tile_b)
    grid = (pl.cdiv(Bp, tb),)

    def resident_vmem():
        return pl.BlockSpec(memory_space=pltpu.MemorySpace.VMEM)

    in_specs = [
        pl.BlockSpec((tb, K), lambda i: (i, 0)),          # fused input (tiled)
        resident_vmem(),                                  # wf  [K, 812]   bf16
        resident_vmem(),                                  # w2  [400, 300] bf16
        resident_vmem(),                                  # wo  [1, 300]   bf16
        pl.BlockSpec(memory_space=pltpu.MemorySpace.SMEM),  # bo [1]       f32
    ]
    out_spec = pl.BlockSpec((tb, 1), lambda i: (i, 0))

    q = pl.pallas_call(
        critic_kernel,
        out_shape=jax.ShapeDtypeStruct((Bp, 1), jnp.float32),
        grid=grid,
        in_specs=in_specs,
        out_specs=out_spec,
        compiler_params=pltpu.CompilerParams(
            dimension_semantics=("parallel",),   # 2-TC sharding on v7x
            vmem_limit_bytes=48 * 1024 * 1024),  # headroom for tb up to ~2048
    )(xa, params["wf"], params["w2"], params["wo"], params["bo"])

    return q[:B]


def init_critic_params(key, state_dim, num_actions):
    """Deterministic init matching the PyTorch module (fan-in uniform for
    fc1/fc2/fc2_action weights, U(-0.003, 0.003) for the output layer).
    Weights stored [in, out] (transposed vs PyTorch); everything f32 here."""
    ks = jax.random.split(key, 8)

    def fanin_uniform(k, fan_in, fan_out):
        v = 1.0 / jnp.sqrt(jnp.asarray(fan_in, jnp.float32))
        return jax.random.uniform(k, (fan_in, fan_out), jnp.float32, -v, v)

    def default_bias(k, fan_in, fan_out):
        v = 1.0 / jnp.sqrt(jnp.asarray(fan_in, jnp.float32))
        return jax.random.uniform(k, (1, fan_out), jnp.float32, -v, v)

    return {
        "w1": fanin_uniform(ks[0], state_dim, 400),
        "b1": default_bias(ks[1], state_dim, 400),
        "w2": fanin_uniform(ks[2], 400, 300),
        "b2": default_bias(ks[3], 400, 300),
        "wa": fanin_uniform(ks[4], num_actions, 300),
        "ba": default_bias(ks[5], num_actions, 300),
        "wo": jax.random.uniform(ks[6], (300, 1), jnp.float32, -0.003, 0.003),
        "bo": jax.random.uniform(ks[7], (1, 1), jnp.float32, -0.003, 0.003),
    }


def prepare_params(p, *, act_lane_offset=512):
    """Kernel-side param layout.

    Fuses fc1, fc2_action and the b1 / (b2+ba) biases into one bf16 weight
    `wf` of shape [S+A+1, act_lane_offset + 300]:
      rows [0, S)      cols [0, 400)            = w1
      rows [S, S+A)    cols [off, off+300)      = wa
      row  S+A (ones)  cols [0, 400)            = b1
      row  S+A (ones)  cols [off, off+300)      = b2 + ba
    The action block starts at a 128-aligned lane so the in-kernel split is a
    cheap aligned slice.
    """
    S, H1 = p["w1"].shape
    A = p["wa"].shape[0]
    H2 = p["w2"].shape[1]
    assert act_lane_offset % 128 == 0 and act_lane_offset >= H1

    K = S + A + 1
    N = act_lane_offset + H2
    wf = jnp.zeros((K, N), jnp.float32)
    wf = wf.at[:S, :H1].set(p["w1"])
    wf = wf.at[S:S + A, act_lane_offset:].set(p["wa"])
    wf = wf.at[S + A, :H1].set(p["b1"][0])
    wf = wf.at[S + A, act_lane_offset:].set((p["b2"] + p["ba"])[0])

    return {
        "wf": wf.astype(jnp.bfloat16),
        "w2": p["w2"].astype(jnp.bfloat16),
        "wo": p["wo"].reshape(1, -1).astype(jnp.bfloat16),
        "bo": p["bo"].reshape(-1).astype(jnp.float32),   # (1,) scalar -> SMEM
    }


def critic_reference_kernel_precision(states, actions, kp):
    """Pure-JAX reference matching the kernel's precision and fused math."""
    f32, bf16 = jnp.float32, jnp.bfloat16
    B = states.shape[0]
    xa = jnp.concatenate(
        [states, actions, jnp.ones((B, 1), states.dtype)], axis=1)
    H1, H2 = kp["w2"].shape
    act_off = kp["wf"].shape[1] - H2
    y = jnp.dot(xa.astype(bf16), kp["wf"], preferred_element_type=f32)
    h1 = jnp.maximum(y[:, :H1], 0.0)
    net = jnp.dot(h1.astype(bf16), kp["w2"],
                  preferred_element_type=f32) + y[:, act_off:]
    net = jnp.maximum(net, 0.0)
    return (jnp.sum(net * kp["wo"].astype(f32), axis=-1, keepdims=True)
            + kp["bo"][0])


def critic_reference_f32(states, actions, p):
    """Full-f32 reference of the PyTorch forward (sanity check)."""
    h1 = jnp.maximum(states @ p["w1"] + p["b1"], 0.0)
    net = h1 @ p["w2"] + p["b2"] + actions @ p["wa"] + p["ba"]
    net = jnp.maximum(net, 0.0)
    return net @ p["wo"] + p["bo"]


if __name__ == "__main__":
    key = jax.random.PRNGKey(0)
    k_param, k_state, k_action = jax.random.split(key, 3)

    batch = 2
    state_dim = 4      # CartPole-style state
    num_actions = 2

    raw_params = init_critic_params(k_param, state_dim, num_actions)
    kparams = prepare_params(raw_params)

    states = jax.random.normal(k_state, (batch, state_dim), jnp.float32)
    actions = jax.random.normal(k_action, (batch, num_actions), jnp.float32)

    q = critic_forward(states, actions, kparams)
    q = jax.block_until_ready(q)
    assert q.shape == (batch, 1)

    # Tight check vs a reference using the same fused bf16-weight precision.
    q_ref = critic_reference_kernel_precision(states, actions, kparams)
    assert jnp.allclose(q, q_ref, atol=2e-3, rtol=2e-3), (q, q_ref)

    # Loose check vs the full-f32 PyTorch-equivalent math (bf16 weight error).
    q_f32 = critic_reference_f32(states, actions, raw_params)
    assert jnp.allclose(q, q_f32, atol=5e-2, rtol=5e-2), (q, q_f32)

    print("KERNEL_OK")
</pallas_src>

<mosaic_0001>
module attributes {stable_mosaic.version = 11 : i64} {
  func.func @critic_kernel(%arg0: i32, %arg1: memref<8x7xf32, #tpu.memory_space<vmem>>, %arg2: memref<7x812xbf16, #tpu.memory_space<vmem>>, %arg3: memref<400x300xbf16, #tpu.memory_space<vmem>>, %arg4: memref<1x300xbf16, #tpu.memory_space<vmem>>, %arg5: memref<1xf32, #tpu.memory_space<smem>>, %arg6: memref<8x1xf32, #tpu.memory_space<vmem>>) attributes {dimension_semantics = [#tpu.dimension_semantics<parallel>], iteration_bounds = array<i64: 1>, scalar_prefetch = 0 : i64, scratch_operands = 0 : i64, tpu.core_type = #tpu.core_type<tc>, window_params = [{transform_indices = @transform_0, window_bounds = array<i64: 8, 7>}, {pipeline_mode = #tpu.pipeline_mode<synchronous>, transform_indices = @transform_1, window_bounds = array<i64: 7, 812>}, {pipeline_mode = #tpu.pipeline_mode<synchronous>, transform_indices = @transform_2, window_bounds = array<i64: 400, 300>}, {pipeline_mode = #tpu.pipeline_mode<synchronous>, transform_indices = @transform_3, window_bounds = array<i64: 1, 300>}, {transform_indices = @transform_4, window_bounds = array<i64: 1>}, {transform_indices = @transform_5, window_bounds = array<i64: 8, 1>}]} {
    %c0 = arith.constant 0 : index
    %c0_0 = arith.constant 0 : index
    %0 = vector.load %arg1[%c0, %c0_0] : memref<8x7xf32, #tpu.memory_space<vmem>>, vector<8x7xf32>
    %1 = arith.truncf %0 : vector<8x7xf32> to vector<8x7xbf16>
    %c0_1 = arith.constant 0 : index
    %c0_2 = arith.constant 0 : index
    %2 = vector.load %arg2[%c0_1, %c0_2] : memref<7x812xbf16, #tpu.memory_space<vmem>>, vector<7x812xbf16>
    %cst = arith.constant dense<0.000000e+00> : vector<8x812xf32>
    %3 = tpu.matmul %1, %2, %cst {dimension_numbers = #tpu.dot_dimension_numbers<[1], [0], [0], [1], [0, 0, 1, 1], [], []>} : vector<8x7xbf16>, vector<7x812xbf16>, vector<8x812xf32> -> vector<8x812xf32>
    %4 = vector.extract_strided_slice %3 {offsets = [0, 0], sizes = [8, 400], strides = [1, 1]} : vector<8x812xf32> to vector<8x400xf32>
    %cst_3 = arith.constant 0.000000e+00 : f32
    %5 = vector.broadcast %cst_3 : f32 to vector<8x400xf32>
    %6 = arith.maximumf %4, %5 : vector<8x400xf32>
    %7 = vector.extract_strided_slice %3 {offsets = [0, 512], sizes = [8, 300], strides = [1, 1]} : vector<8x812xf32> to vector<8x300xf32>
    %8 = arith.truncf %6 : vector<8x400xf32> to vector<8x400xbf16>
    %c0_4 = arith.constant 0 : index
    %c0_5 = arith.constant 0 : index
    %9 = vector.load %arg3[%c0_4, %c0_5] : memref<400x300xbf16, #tpu.memory_space<vmem>>, vector<400x300xbf16>
    %cst_6 = arith.constant dense<0.000000e+00> : vector<8x300xf32>
    %10 = tpu.matmul %8, %9, %cst_6 {dimension_numbers = #tpu.dot_dimension_numbers<[1], [0], [0], [1], [0, 0, 1, 1], [], []>} : vector<8x400xbf16>, vector<400x300xbf16>, vector<8x300xf32> -> vector<8x300xf32>
    %11 = arith.addf %10, %7 : vector<8x300xf32>
    %cst_7 = arith.constant 0.000000e+00 : f32
    %12 = vector.broadcast %cst_7 : f32 to vector<8x300xf32>
    %13 = arith.maximumf %11, %12 : vector<8x300xf32>
    %c0_8 = arith.constant 0 : index
    %c0_9 = arith.constant 0 : index
    %14 = vector.load %arg4[%c0_8, %c0_9] : memref<1x300xbf16, #tpu.memory_space<vmem>>, vector<1x300xbf16>
    %15 = arith.extf %14 : vector<1x300xbf16> to vector<1x300xf32>
    %16 = vector.broadcast %15 : vector<1x300xf32> to vector<8x300xf32>
    %17 = arith.mulf %13, %16 : vector<8x300xf32>
    %cst_10 = arith.constant dense<0.000000e+00> : vector<8xf32>
    %18 = vector.multi_reduction <add>, %17, %cst_10 [1] : vector<8x300xf32> to vector<8xf32>
    %19 = vector.shape_cast %18 : vector<8xf32> to vector<8x1xf32>
    %c0_11 = arith.constant 0 : index
    %20 = memref.load %arg5[%c0_11] : memref<1xf32, #tpu.memory_space<smem>>
    %21 = vector.broadcast %20 : f32 to vector<8x1xf32>
    %22 = arith.addf %19, %21 : vector<8x1xf32>
    %c0_12 = arith.constant 0 : index
    %c0_13 = arith.constant 0 : index
    %23 = vector.load %arg6[%c0_12, %c0_13] : memref<8x1xf32, #tpu.memory_space<vmem>>, vector<8x1xf32>
    tpu.vector_store %arg6[%c0_12, %c0_13], %22 {strides = array<i32>} : memref<8x1xf32, #tpu.memory_space<vmem>>, vector<8x1xf32>,
    return
  }
  func.func @transform_0(%arg0: i32) -> (i32, i32) {
    %c0_i32 = arith.constant 0 : i32
    %c0_i32_0 = arith.constant 0 : i32
    return %arg0, %c0_i32 : i32, i32
  }
  func.func @transform_1(%arg0: i32) -> (i32, i32) {
    %c0_i32 = arith.constant 0 : i32
    %c0_i32_0 = arith.constant 0 : i32
    %c0_i32_1 = arith.constant 0 : i32
    return %c0_i32, %c0_i32_0 : i32, i32
  }
  func.func @transform_2(%arg0: i32) -> (i32, i32) {
    %c0_i32 = arith.constant 0 : i32
    %c0_i32_0 = arith.constant 0 : i32
    %c0_i32_1 = arith.constant 0 : i32
    return %c0_i32, %c0_i32_0 : i32, i32
  }
  func.func @transform_3(%arg0: i32) -> (i32, i32) {
    %c0_i32 = arith.constant 0 : i32
    %c0_i32_0 = arith.constant 0 : i32
    %c0_i32_1 = arith.constant 0 : i32
    return %c0_i32, %c0_i32_0 : i32, i32
  }
  func.func @transform_4(%arg0: i32) -> i32 {
    %c0_i32 = arith.constant 0 : i32
    %c0_i32_0 = arith.constant 0 : i32
    return %c0_i32 : i32
  }
  func.func @transform_5(%arg0: i32) -> (i32, i32) {
    %c0_i32 = arith.constant 0 : i32
    %c0_i32_0 = arith.constant 0 : i32
    return %arg0, %c0_i32 : i32, i32
  }
}

</mosaic_0001>

<llo_original>
// kernel: tpu_custom_call.1
$region0: #{tpu_custom_call.1}
  #allocation0 [shape = 'u32[]', space=smem, size = 0x4, offset = 0x4, fixed_abs, tag = 'smem constant byte address 0x4 - core index']
  #allocation1 [shape = 'u32[72,128]{1,0:T(1,128)}', space=vmem, size = 0x9000, scoped, tag = 'internal scratch']
  #allocation2 [shape = 'f32[1]{0:T(128)S(6)}', space=smem, size = 0x200, scoped, tag = 'scoped memory for tpu_custom_call.1']
  %s0 = inlined_call_operand.hbm [shape: f32[8,7], index: 0, kind: input, shape index: {}]
  %s1 = inlined_call_operand.hbm [shape: bf16[7,812], index: 1, kind: input, shape index: {}]
  %s2 = inlined_call_operand.hbm [shape: bf16[400,300], index: 2, kind: input, shape index: {}]
  %s3 = inlined_call_operand.vmem [shape: bf16[1,300], index: 3, kind: input, shape index: {}]
  %s4 = inlined_call_operand.<no memory space> [shape: f32[1], index: 4, kind: input, shape index: {}]
  %s5 = inlined_call_operand.vmem [shape: f32[8,1], index: 5, kind: output, shape index: {}]
  %s6 = sld [smem:[#allocation0]]
  $region42: #{tpu_custom_call.1} parent=0
    _
  %s8 = ssub.s32 1, %s6
  %s9 = scalar_select 0, %s8, %s6
  %10 = sst [smem:[#allocation2]] %s4
  $region1: #{tpu_custom_call.1} parent=0
    #allocation3 [shape = 'u8[4096]{0}', space=vmem, size = 0x1000, scoped, tag = 'input window, operand 0, single buffered']
    #allocation4 [shape = 's32[1]{0}', space=sflag, size = 0x4, scoped, tag = 'scoped memory for tpu_custom_call.1']
    #allocation5 [shape = 'u8[14336]{0}', space=vmem, size = 0x3800, scoped, tag = 'input window, operand 1, single buffered']
    #allocation6 [shape = 's32[1]{0}', space=sflag, size = 0x4, scoped, tag = 'scoped memory for tpu_custom_call.1']
    #allocation7 [shape = 'u8[307200]{0}', space=vmem, size = 0x4b000, scoped, tag = 'input window, operand 2, single buffered']
    %11 = vsyncpa [#allocation4], 0
    %12 = vsyncpa [#allocation6], 0
    // Predicated region
    $region2: #{tpu_custom_call.1} parent=1 // pred_check
      _
    $region3: #{tpu_custom_call.1} parent=1 // pred_check_branch
      %14 = sbr.rel (0) target = $region5
    $region4: #{tpu_custom_call.1} parent=1 // pred_region
      %16 = vsyncadd [#allocation4], 0
      %s18 = sshll.u32 %s0, 4
      %s19 = int_to_ptr.hbm [resolvable:$true] %s18
      %s20 = sshll.u32 [#allocation3], 4
      %s21 = int_to_ptr.vmem [resolvable:$true] %s20
      %23 = dma.hbm_to_vmem [thread:$0]  %s19, 128, %s21, [#allocation4]
    $region5: #{tpu_custom_call.1} parent=1 // pred_fallthru
      _
    // Predicated region
    $region6: #{tpu_custom_call.1} parent=1 // pred_check
      _
    $region7: #{tpu_custom_call.1} parent=1 // pred_check_branch
      %25 = sbr.rel (0) target = $region9
    $region8: #{tpu_custom_call.1} parent=1 // pred_region
      %27 = vsyncadd [#allocation6], 0
      %s29 = sshll.u32 %s1, 4
      %s30 = int_to_ptr.hbm [resolvable:$true] %s29
      %s31 = sshll.u32 [#allocation5], 4
      %s32 = int_to_ptr.vmem [resolvable:$true] %s31
      %34 = dma.hbm_to_vmem [thread:$0]  %s30, 448, %s32, [#allocation6]
    $region9: #{tpu_custom_call.1} parent=1 // pred_fallthru
      _
    // Predicated region
    $region10: #{tpu_custom_call.1} parent=1 // pred_check
      _
    $region11: #{tpu_custom_call.1} parent=1 // pred_check_branch
      %36 = sbr.rel (0) target = $region13
    $region12: #{tpu_custom_call.1} parent=1 // pred_region
      %38 = vsyncadd [#allocation6], 0
      %s39 = sshll.u32 %s2, 4
      %s40 = int_to_ptr.hbm [resolvable:$true] %s39
      %s41 = sshll.u32 [#allocation7], 4
      %s42 = int_to_ptr.vmem [resolvable:$true] %s41
      %47 = dma.hbm_to_vmem [thread:$0]  %s40, 9600, %s42, [#allocation6], 192, 192, 12
    $region13: #{tpu_custom_call.1} parent=1 // pred_fallthru
      _
    // Predicated region
    $region14: #{tpu_custom_call.1} parent=1 // pred_check
      _
    $region15: #{tpu_custom_call.1} parent=1 // pred_check_branch
      %49 = sbr.rel (0) target = $region17
    $region16: #{tpu_custom_call.1} parent=1 // pred_region
      _
    $region17: #{tpu_custom_call.1} parent=1 // pred_fallthru
      _
    // Predicated region
    $region18: #{tpu_custom_call.1} parent=1 // pred_check
      _
    $region19: #{tpu_custom_call.1} parent=1 // pred_check_branch
      %51 = sbr.rel (0) target = $region21
    $region20: #{tpu_custom_call.1} parent=1 // pred_region
      _
    $region21: #{tpu_custom_call.1} parent=1 // pred_fallthru
      _
    // Predicated region
    $region22: #{tpu_custom_call.1} parent=1 // pred_check
      _
    $region23: #{tpu_custom_call.1} parent=1 // pred_check_branch
      %53 = sbr.rel (0) target = $region25
    $region24: #{tpu_custom_call.1} parent=1 // pred_region
      %55 = dma.done [#allocation4], 128
    $region25: #{tpu_custom_call.1} parent=1 // pred_fallthru
      _
    // Predicated region
    $region26: #{tpu_custom_call.1} parent=1 // pred_check
      _
    $region27: #{tpu_custom_call.1} parent=1 // pred_check_branch
      %57 = sbr.rel (0) target = $region29
    $region28: #{tpu_custom_call.1} parent=1 // pred_region
      %59 = dma.done [#allocation6], 448
    $region29: #{tpu_custom_call.1} parent=1 // pred_fallthru
      _
    // Predicated region
    $region30: #{tpu_custom_call.1} parent=1 // pred_check
      _
    $region31: #{tpu_custom_call.1} parent=1 // pred_check_branch
      %61 = sbr.rel (0) target = $region33
    $region32: #{tpu_custom_call.1} parent=1 // pred_region
      %63 = dma.done [#allocation6], 9600
    $region33: #{tpu_custom_call.1} parent=1 // pred_fallthru
      _
    %v65 = vld [vmem:[#allocation3] sm:$0xff]
    %v66 = vpack.c.bf16 %v65, %v65
    %v67 = vld [vmem:[#allocation5] sm:$0xff]
    %v68 = vld [vmem:[#allocation5 + $0x8] sm:$0xff]
    %v69 = vld [vmem:[#allocation5 + $0x10] sm:$0xff]
    %v70 = vld [vmem:[#allocation5 + $0x18] sm:$0xf]
    %v75 = vunpack.c.l.b16 %v67
    %v76 = vunpack.c.h.b16 %v67
    %v77 = vunpack.c.l.b16 %v68
    %v78 = vunpack.c.h.b16 %v68
    %v79 = vunpack.c.l.b16 %v69
    %v80 = vunpack.c.h.b16 %v69
    %v81 = vunpack.c.l.b16 %v70
    %v82 = vpack.c.b16 %v75, %v75
    %v83 = vpack.c.b16 %v76, %v76
    %v84 = vpack.c.b16 %v77, %v77
    %v85 = vpack.c.b16 %v78, %v78
    %v86 = vpack.c.b16 %v79, %v79
    %v87 = vpack.c.b16 %v80, %v80
    %v88 = vpack.c.b16 %v81, %v81
    %vm89 = vcmask 56320
    %v91 = vsel %vm89, %v66, 0
    %vm93 = vcmask 1042432
    %vm94 = vcmask 1043456
    %v95 = vsel %vm93, 4294967295, 65535
    %v96 = vsel %vm94, %v95, 0
    %v98 = vand.u32 %v82, %v96
    %v101 = vand.u32 %v83, %v96
    %v104 = vand.u32 %v84, %v96
    %v107 = vand.u32 %v85, %v96
    %v110 = vand.u32 %v86, %v96
    %v113 = vand.u32 %v87, %v96
    %v116 = vand.u32 %v88, %v96
    %118 = vmatpush.bf16.msra.mxu0 0
    %119 = vmatpush.bf16.msra.mxu0 0
    %120 = vmatpush.bf16.msra.mxu0 0
    %121 = vmatpush.bf16.msra.mxu0 0
    %122 = vmatpush.bf16.msra.mxu0 0
    %123 = vmatpush.bf16.msra.mxu0 0
    %124 = vmatpush.bf16.msra.mxu0 0
    %125 = vmatpush.bf16.msra.mxu0 %v98
    %126 = vmatmul.bf16.gmra.mxu0 %v91
    %v127 = vpop.f32.mrf.mxu0
    %v128 = vadd.f32 0.0, %v127
    %v129 = vpop.f32.mrf.mxu0
    %130 = vdwg.mxu0
    %131 = vmatpush.bf16.msra.mxu0 0
    %132 = vmatpush.bf16.msra.mxu0 0
    %133 = vmatpush.bf16.msra.mxu0 0
    %134 = vmatpush.bf16.msra.mxu0 0
    %135 = vmatpush.bf16.msra.mxu0 0
    %136 = vmatpush.bf16.msra.mxu0 0
    %137 = vmatpush.bf16.msra.mxu0 0
    %138 = vmatpush.bf16.msra.mxu0 %v101
    %139 = vmatmul.bf16.gmra.mxu0 %v91
    %v140 = vpop.f32.mrf.mxu0
    %v141 = vadd.f32 0.0, %v140
    %v142 = vpop.f32.mrf.mxu0
    %143 = vdwg.mxu0
    %144 = vmatpush.bf16.msra.mxu0 0
    %145 = vmatpush.bf16.msra.mxu0 0
    %146 = vmatpush.bf16.msra.mxu0 0
    %147 = vmatpush.bf16.msra.mxu0 0
    %148 = vmatpush.bf16.msra.mxu0 0
    %149 = vmatpush.bf16.msra.mxu0 0
    %150 = vmatpush.bf16.msra.mxu0 0
    %151 = vmatpush.bf16.msra.mxu0 %v104
    %152 = vmatmul.bf16.gmra.mxu0 %v91
    %v153 = vpop.f32.mrf.mxu0
    %v154 = vadd.f32 0.0, %v153
    %v155 = vpop.f32.mrf.mxu0
    %156 = vdwg.mxu0
    %157 = vmatpush.bf16.msra.mxu0 0
    %158 = vmatpush.bf16.msra.mxu0 0
    %159 = vmatpush.bf16.msra.mxu0 0
    %160 = vmatpush.bf16.msra.mxu0 0
    %161 = vmatpush.bf16.msra.mxu0 0
    %162 = vmatpush.bf16.msra.mxu0 0
    %163 = vmatpush.bf16.msra.mxu0 0
    %164 = vmatpush.bf16.msra.mxu0 %v107
    %165 = vmatmul.bf16.gmra.mxu0 %v91
    %v166 = vpop.f32.mrf.mxu0
    %v167 = vadd.f32 0.0, %v166
    %v168 = vpop.f32.mrf.mxu0
    %169 = vdwg.mxu0
    %170 = vmatpush.bf16.msra.mxu0 0
    %171 = vmatpush.bf16.msra.mxu0 0
    %172 = vmatpush.bf16.msra.mxu0 0
    %173 = vmatpush.bf16.msra.mxu0 0
    %174 = vmatpush.bf16.msra.mxu0 0
    %175 = vmatpush.bf16.msra.mxu0 0
    %176 = vmatpush.bf16.msra.mxu0 0
    %177 = vmatpush.bf16.msra.mxu0 %v110
    %178 = vmatmul.bf16.gmra.mxu0 %v91
    %v179 = vpop.f32.mrf.mxu0
    %v180 = vadd.f32 0.0, %v179
    %v181 = vpop.f32.mrf.mxu0
    %182 = vdwg.mxu0
    %183 = vmatpush.bf16.msra.mxu0 0
    %184 = vmatpush.bf16.msra.mxu0 0
    %185 = vmatpush.bf16.msra.mxu0 0
    %186 = vmatpush.bf16.msra.mxu0 0
    %187 = vmatpush.bf16.msra.mxu0 0
    %188 = vmatpush.bf16.msra.mxu0 0
    %189 = vmatpush.bf16.msra.mxu0 0
    %190 = vmatpush.bf16.msra.mxu0 %v113
    %191 = vmatmul.bf16.gmra.mxu0 %v91
    %v192 = vpop.f32.mrf.mxu0
    %v193 = vadd.f32 0.0, %v192
    %v194 = vpop.f32.mrf.mxu0
    %195 = vdwg.mxu0
    %196 = vmatpush.bf16.msra.mxu0 0
    %197 = vmatpush.bf16.msra.mxu0 0
    %198 = vmatpush.bf16.msra.mxu0 0
    %199 = vmatpush.bf16.msra.mxu0 0
    %200 = vmatpush.bf16.msra.mxu0 0
    %201 = vmatpush.bf16.msra.mxu0 0
    %202 = vmatpush.bf16.msra.mxu0 0
    %203 = vmatpush.bf16.msra.mxu0 %v116
    %204 = vmatmul.bf16.gmra.mxu0 %v91
    %v205 = vpop.f32.mrf.mxu0
    %v206 = vadd.f32 0.0, %v205
    %v207 = vpop.f32.mrf.mxu0
    %208 = vdwg.mxu0
    %v209 = vmax.f32 %v128, 0.0
    %v210 = vmax.f32 %v141, 0.0
    %v211 = vmax.f32 %v154, 0.0
    %v212 = vmax.f32 %v167, 0.0
    %v213 = vpack.c.bf16 %v209, %v209
    %v214 = vpack.c.bf16 %v210, %v210
    %v215 = vpack.c.bf16 %v211, %v211
    %v216 = vpack.c.bf16 %v212, %v212
    %v217 = vld [vmem:[#allocation7] sm:$0xff]
    %v218 = vld [vmem:[#allocation7 + $0x8] sm:$0xf]
    %v219 = vld [vmem:[#allocation7 + $0xc] sm:$0xff]
    %v220 = vld [vmem:[#allocation7 + $0x14] sm:$0xf]
    %v221 = vld [vmem:[#allocation7 + $0x18] sm:$0xff]
    %v222 = vld [vmem:[#allocation7 + $0x20] sm:$0xf]
    %v223 = vld [vmem:[#allocation7 + $0x24] sm:$0xff]
    %v224 = vld [vmem:[#allocation7 + $0x2c] sm:$0xf]
    %v225 = vld [vmem:[#allocation7 + $0x30] sm:$0xff]
    %v226 = vld [vmem:[#allocation7 + $0x38] sm:$0xf]
    %v227 = vld [vmem:[#allocation7 + $0x3c] sm:$0xff]
    %v228 = vld [vmem:[#allocation7 + $0x44] sm:$0xf]
    %v229 = vld [vmem:[#allocation7 + $0x48] sm:$0xff]
    %v230 = vld [vmem:[#allocation7 + $0x50] sm:$0xf]
    %v231 = vld [vmem:[#allocation7 + $0x54] sm:$0xff]
    %v232 = vld [vmem:[#allocation7 + $0x5c] sm:$0xf]
    %v233 = vld [vmem:[#allocation7 + $0x60] sm:$0xff]
    %v234 = vld [vmem:[#allocation7 + $0x68] sm:$0xf]
    %v235 = vld [vmem:[#allocation7 + $0x6c] sm:$0xff]
    %v236 = vld [vmem:[#allocation7 + $0x74] sm:$0xf]
    %v237 = vld [vmem:[#allocation7 + $0x78] sm:$0xff]
    %v238 = vld [vmem:[#allocation7 + $0x80] sm:$0xf]
    %v239 = vld [vmem:[#allocation7 + $0x84] sm:$0xff]
    %v240 = vld [vmem:[#allocation7 + $0x8c] sm:$0xf]
    %v241 = vld [vmem:[#allocation7 + $0x90] sm:$0xff]
    %v242 = vld [vmem:[#allocation7 + $0x98] sm:$0xf]
    %v243 = vld [vmem:[#allocation7 + $0x9c] sm:$0xff]
    %v244 = vld [vmem:[#allocation7 + $0xa4] sm:$0xf]
    %v245 = vld [vmem:[#allocation7 + $0xa8] sm:$0xff]
    %v246 = vld [vmem:[#allocation7 + $0xb0] sm:$0xf]
    %v247 = vld [vmem:[#allocation7 + $0xb4] sm:$0xff]
    %v248 = vld [vmem:[#allocation7 + $0xbc] sm:$0xf]
    %v249 = vld [vmem:[#allocation7 + $0xc0] sm:$0xff]
    %v250 = vld [vmem:[#allocation7 + $0xc8] sm:$0xf]
    %v251 = vld [vmem:[#allocation7 + $0xcc] sm:$0xff]
    %v252 = vld [vmem:[#allocation7 + $0xd4] sm:$0xf]
    %v253 = vld [vmem:[#allocation7 + $0xd8] sm:$0xff]
    %v254 = vld [vmem:[#allocation7 + $0xe0] sm:$0xf]
    %v255 = vld [vmem:[#allocation7 + $0xe4] sm:$0xff]
    %v256 = vld [vmem:[#allocation7 + $0xec] sm:$0xf]
    %v257 = vld [vmem:[#allocation7 + $0xf0] sm:$0xff]
    %v258 = vld [vmem:[#allocation7 + $0xf8] sm:$0xf]
    %v259 = vld [vmem:[#allocation7 + $0xfc] sm:$0xff]
    %v260 = vld [vmem:[#allocation7 + $0x104] sm:$0xf]
    %v261 = vld [vmem:[#allocation7 + $0x108] sm:$0xff]
    %v262 = vld [vmem:[#allocation7 + $0x110] sm:$0xf]
    %v263 = vld [vmem:[#allocation7 + $0x114] sm:$0xff]
    %v264 = vld [vmem:[#allocation7 + $0x11c] sm:$0xf]
    %v265 = vld [vmem:[#allocation7 + $0x120] sm:$0xff]
    %v266 = vld [vmem:[#allocation7 + $0x128] sm:$0xf]
    %v267 = vld [vmem:[#allocation7 + $0x12c] sm:$0xff]
    %v268 = vld [vmem:[#allocation7 + $0x134] sm:$0xf]
    %v269 = vld [vmem:[#allocation7 + $0x138] sm:$0xff]
    %v270 = vld [vmem:[#allocation7 + $0x140] sm:$0xf]
    %v271 = vld [vmem:[#allocation7 + $0x144] sm:$0xff]
    %v272 = vld [vmem:[#allocation7 + $0x14c] sm:$0xf]
    %v273 = vld [vmem:[#allocation7 + $0x150] sm:$0xff]
    %v274 = vld [vmem:[#allocation7 + $0x158] sm:$0xf]
    %v275 = vld [vmem:[#allocation7 + $0x15c] sm:$0xff]
    %v276 = vld [vmem:[#allocation7 + $0x164] sm:$0xf]
    %v277 = vld [vmem:[#allocation7 + $0x168] sm:$0xff]
    %v278 = vld [vmem:[#allocation7 + $0x170] sm:$0xf]
    %v279 = vld [vmem:[#allocation7 + $0x174] sm:$0xff]
    %v280 = vld [vmem:[#allocation7 + $0x17c] sm:$0xf]
    %v281 = vld [vmem:[#allocation7 + $0x180] sm:$0xff]
    %v282 = vld [vmem:[#allocation7 + $0x188] sm:$0xf]
    %v283 = vld [vmem:[#allocation7 + $0x18c] sm:$0xff]
    %v284 = vld [vmem:[#allocation7 + $0x194] sm:$0xf]
    %v285 = vld [vmem:[#allocation7 + $0x198] sm:$0xff]
    %v286 = vld [vmem:[#allocation7 + $0x1a0] sm:$0xf]
    %v287 = vld [vmem:[#allocation7 + $0x1a4] sm:$0xff]
    %v288 = vld [vmem:[#allocation7 + $0x1ac] sm:$0xf]
    %v289 = vld [vmem:[#allocation7 + $0x1b0] sm:$0xff]
    %v290 = vld [vmem:[#allocation7 + $0x1b8] sm:$0xf]
    %v291 = vld [vmem:[#allocation7 + $0x1bc] sm:$0xff]
    %v292 = vld [vmem:[#allocation7 + $0x1c4] sm:$0xf]
    %v293 = vld [vmem:[#allocation7 + $0x1c8] sm:$0xff]
    %v294 = vld [vmem:[#allocation7 + $0x1d0] sm:$0xf]
    %v295 = vld [vmem:[#allocation7 + $0x1d4] sm:$0xff]
    %v296 = vld [vmem:[#allocation7 + $0x1dc] sm:$0xf]
    %v297 = vld [vmem:[#allocation7 + $0x1e0] sm:$0xff]
    %v298 = vld [vmem:[#allocation7 + $0x1e8] sm:$0xf]
    %v299 = vld [vmem:[#allocation7 + $0x1ec] sm:$0xff]
    %v300 = vld [vmem:[#allocation7 + $0x1f4] sm:$0xf]
    %v301 = vld [vmem:[#allocation7 + $0x1f8] sm:$0xff]
    %v302 = vld [vmem:[#allocation7 + $0x200] sm:$0xf]
    %v303 = vld [vmem:[#allocation7 + $0x204] sm:$0xff]
    %v304 = vld [vmem:[#allocation7 + $0x20c] sm:$0xf]
    %v305 = vld [vmem:[#allocation7 + $0x210] sm:$0xff]
    %v306 = vld [vmem:[#allocation7 + $0x218] sm:$0xf]
    %v307 = vld [vmem:[#allocation7 + $0x21c] sm:$0xff]
    %v308 = vld [vmem:[#allocation7 + $0x224] sm:$0xf]
    %v309 = vld [vmem:[#allocation7 + $0x228] sm:$0xff]
    %v310 = vld [vmem:[#allocation7 + $0x230] sm:$0xf]
    %v311 = vld [vmem:[#allocation7 + $0x234] sm:$0xff]
    %v312 = vld [vmem:[#allocation7 + $0x23c] sm:$0xf]
    %v313 = vld [vmem:[#allocation7 + $0x240] sm:$0xff]
    %v314 = vld [vmem:[#allocation7 + $0x248] sm:$0xf]
    %v315 = vld [vmem:[#allocation7 + $0x24c] sm:$0xff]
    %v316 = vld [vmem:[#allocation7 + $0x254] sm:$0xf]
    %v417 = vunpack.c.l.b16 %v217
    %v418 = vunpack.c.h.b16 %v217
    %v419 = vunpack.c.l.b16 %v218
    %v420 = vunpack.c.l.b16 %v219
    %v421 = vunpack.c.h.b16 %v219
    %v422 = vunpack.c.l.b16 %v220
    %v423 = vunpack.c.l.b16 %v221
    %v424 = vunpack.c.h.b16 %v221
    %v425 = vunpack.c.l.b16 %v222
    %v426 = vunpack.c.l.b16 %v223
    %v427 = vunpack.c.h.b16 %v223
    %v428 = vunpack.c.l.b16 %v224
    %v429 = vunpack.c.l.b16 %v225
    %v430 = vunpack.c.h.b16 %v225
    %v431 = vunpack.c.l.b16 %v226
    %v432 = vunpack.c.l.b16 %v227
    %v433 = vunpack.c.h.b16 %v227
    %v434 = vunpack.c.l.b16 %v228
    %v435 = vunpack.c.l.b16 %v229
    %v436 = vunpack.c.h.b16 %v229
    %v437 = vunpack.c.l.b16 %v230
    %v438 = vunpack.c.l.b16 %v231
    %v439 = vunpack.c.h.b16 %v231
    %v440 = vunpack.c.l.b16 %v232
    %v441 = vunpack.c.l.b16 %v233
    %v442 = vunpack.c.h.b16 %v233
    %v443 = vunpack.c.l.b16 %v234
    %v444 = vunpack.c.l.b16 %v235
    %v445 = vunpack.c.h.b16 %v235
    %v446 = vunpack.c.l.b16 %v236
    %v447 = vunpack.c.l.b16 %v237
    %v448 = vunpack.c.h.b16 %v237
    %v449 = vunpack.c.l.b16 %v238
    %v450 = vunpack.c.l.b16 %v239
    %v451 = vunpack.c.h.b16 %v239
    %v452 = vunpack.c.l.b16 %v240
    %v453 = vunpack.c.l.b16 %v241
    %v454 = vunpack.c.h.b16 %v241
    %v455 = vunpack.c.l.b16 %v242
    %v456 = vunpack.c.l.b16 %v243
    %v457 = vunpack.c.h.b16 %v243
    %v458 = vunpack.c.l.b16 %v244
    %v459 = vunpack.c.l.b16 %v245
    %v460 = vunpack.c.h.b16 %v245
    %v461 = vunpack.c.l.b16 %v246
    %v462 = vunpack.c.l.b16 %v247
    %v463 = vunpack.c.h.b16 %v247
    %v464 = vunpack.c.l.b16 %v248
    %v465 = vunpack.c.l.b16 %v249
    %v466 = vunpack.c.h.b16 %v249
    %v467 = vunpack.c.l.b16 %v250
    %v468 = vunpack.c.l.b16 %v251
    %v469 = vunpack.c.h.b16 %v251
    %v470 = vunpack.c.l.b16 %v252
    %v471 = vunpack.c.l.b16 %v253
    %v472 = vunpack.c.h.b16 %v253
    %v473 = vunpack.c.l.b16 %v254
    %v474 = vunpack.c.l.b16 %v255
    %v475 = vunpack.c.h.b16 %v255
    %v476 = vunpack.c.l.b16 %v256
    %v477 = vunpack.c.l.b16 %v257
    %v478 = vunpack.c.h.b16 %v257
    %v479 = vunpack.c.l.b16 %v258
    %v480 = vunpack.c.l.b16 %v259
    %v481 = vunpack.c.h.b16 %v259
    %v482 = vunpack.c.l.b16 %v260
    %v483 = vunpack.c.l.b16 %v261
    %v484 = vunpack.c.h.b16 %v261
    %v485 = vunpack.c.l.b16 %v262
    %v486 = vunpack.c.l.b16 %v263
    %v487 = vunpack.c.h.b16 %v263
    %v488 = vunpack.c.l.b16 %v264
    %v489 = vunpack.c.l.b16 %v265
    %v490 = vunpack.c.h.b16 %v265
    %v491 = vunpack.c.l.b16 %v266
    %v492 = vunpack.c.l.b16 %v267
    %v493 = vunpack.c.h.b16 %v267
    %v494 = vunpack.c.l.b16 %v268
    %v495 = vunpack.c.l.b16 %v269
    %v496 = vunpack.c.h.b16 %v269
    %v497 = vunpack.c.l.b16 %v270
    %v498 = vunpack.c.l.b16 %v271
    %v499 = vunpack.c.h.b16 %v271
    %v500 = vunpack.c.l.b16 %v272
    %v501 = vunpack.c.l.b16 %v273
    %v502 = vunpack.c.h.b16 %v273
    %v503 = vunpack.c.l.b16 %v274
    %v504 = vunpack.c.l.b16 %v275
    %v505 = vunpack.c.h.b16 %v275
    %v506 = vunpack.c.l.b16 %v276
    %v507 = vunpack.c.l.b16 %v277
    %v508 = vunpack.c.h.b16 %v277
    %v509 = vunpack.c.l.b16 %v278
    %v510 = vunpack.c.l.b16 %v279
    %v511 = vunpack.c.h.b16 %v279
    %v512 = vunpack.c.l.b16 %v280
    %v513 = vunpack.c.l.b16 %v281
    %v514 = vunpack.c.h.b16 %v281
    %v515 = vunpack.c.l.b16 %v282
    %v516 = vunpack.c.l.b16 %v283
    %v517 = vunpack.c.h.b16 %v283
    %v518 = vunpack.c.l.b16 %v284
    %v519 = vunpack.c.l.b16 %v285
    %v520 = vunpack.c.h.b16 %v285
    %v521 = vunpack.c.l.b16 %v286
    %v522 = vunpack.c.l.b16 %v287
    %v523 = vunpack.c.h.b16 %v287
    %v524 = vunpack.c.l.b16 %v288
    %v525 = vunpack.c.l.b16 %v289
    %v526 = vunpack.c.h.b16 %v289
    %v527 = vunpack.c.l.b16 %v290
    %v528 = vunpack.c.l.b16 %v291
    %v529 = vunpack.c.h.b16 %v291
    %v530 = vunpack.c.l.b16 %v292
    %v531 = vunpack.c.l.b16 %v293
    %v532 = vunpack.c.h.b16 %v293
    %v533 = vunpack.c.l.b16 %v294
    %v534 = vunpack.c.l.b16 %v295
    %v535 = vunpack.c.h.b16 %v295
    %v536 = vunpack.c.l.b16 %v296
    %v537 = vunpack.c.l.b16 %v297
    %v538 = vunpack.c.h.b16 %v297
    %v539 = vunpack.c.l.b16 %v298
    %v540 = vunpack.c.l.b16 %v299
    %v541 = vunpack.c.h.b16 %v299
    %v542 = vunpack.c.l.b16 %v300
    %v543 = vunpack.c.l.b16 %v301
    %v544 = vunpack.c.h.b16 %v301
    %v545 = vunpack.c.l.b16 %v302
    %v546 = vunpack.c.l.b16 %v303
    %v547 = vunpack.c.h.b16 %v303
    %v548 = vunpack.c.l.b16 %v304
    %v549 = vunpack.c.l.b16 %v305
    %v550 = vunpack.c.h.b16 %v305
    %v551 = vunpack.c.l.b16 %v306
    %v552 = vunpack.c.l.b16 %v307
    %v553 = vunpack.c.h.b16 %v307
    %v554 = vunpack.c.l.b16 %v308
    %v555 = vunpack.c.l.b16 %v309
    %v556 = vunpack.c.h.b16 %v309
    %v557 = vunpack.c.l.b16 %v310
    %v558 = vunpack.c.l.b16 %v311
    %v559 = vunpack.c.h.b16 %v311
    %v560 = vunpack.c.l.b16 %v312
    %v561 = vunpack.c.l.b16 %v313
    %v562 = vunpack.c.h.b16 %v313
    %v563 = vunpack.c.l.b16 %v314
    %v564 = vunpack.c.l.b16 %v315
    %v565 = vunpack.c.h.b16 %v315
    %v566 = vunpack.c.l.b16 %v316
    %v567 = vpack.c.b16 %v420, %v417
    %v568 = vpack.c.b16 %v421, %v418
    %v569 = vpack.c.b16 %v422, %v419
    %v570 = vpack.c.b16 %v426, %v423
    %v571 = vpack.c.b16 %v427, %v424
    %v572 = vpack.c.b16 %v428, %v425
    %v573 = vpack.c.b16 %v432, %v429
    %v574 = vpack.c.b16 %v433, %v430
    %v575 = vpack.c.b16 %v434, %v431
    %v576 = vpack.c.b16 %v438, %v435
    %v577 = vpack.c.b16 %v439, %v436
    %v578 = vpack.c.b16 %v440, %v437
    %v579 = vpack.c.b16 %v444, %v441
    %v580 = vpack.c.b16 %v445, %v442
    %v581 = vpack.c.b16 %v446, %v443
    %v582 = vpack.c.b16 %v450, %v447
    %v583 = vpack.c.b16 %v451, %v448
    %v584 = vpack.c.b16 %v452, %v449
    %v585 = vpack.c.b16 %v456, %v453
    %v586 = vpack.c.b16 %v457, %v454
    %v587 = vpack.c.b16 %v458, %v455
    %v588 = vpack.c.b16 %v462, %v459
    %v589 = vpack.c.b16 %v463, %v460
    %v590 = vpack.c.b16 %v464, %v461
    %v591 = vpack.c.b16 %v468, %v465
    %v592 = vpack.c.b16 %v469, %v466
    %v593 = vpack.c.b16 %v470, %v467
    %v594 = vpack.c.b16 %v474, %v471
    %v595 = vpack.c.b16 %v475, %v472
    %v596 = vpack.c.b16 %v476, %v473
    %v597 = vpack.c.b16 %v480, %v477
    %v598 = vpack.c.b16 %v481, %v478
    %v599 = vpack.c.b16 %v482, %v479
    %v600 = vpack.c.b16 %v486, %v483
    %v601 = vpack.c.b16 %v487, %v484
    %v602 = vpack.c.b16 %v488, %v485
    %v603 = vpack.c.b16 %v492, %v489
    %v604 = vpack.c.b16 %v493, %v490
    %v605 = vpack.c.b16 %v494, %v491
    %v606 = vpack.c.b16 %v498, %v495
    %v607 = vpack.c.b16 %v499, %v496
    %v608 = vpack.c.b16 %v500, %v497
    %v609 = vpack.c.b16 %v504, %v501
    %v610 = vpack.c.b16 %v505, %v502
    %v611 = vpack.c.b16 %v506, %v503
    %v612 = vpack.c.b16 %v510, %v507
    %v613 = vpack.c.b16 %v511, %v508
    %v614 = vpack.c.b16 %v512, %v509
    %v615 = vpack.c.b16 %v516, %v513
    %v616 = vpack.c.b16 %v517, %v514
    %v617 = vpack.c.b16 %v518, %v515
    %v618 = vpack.c.b16 %v522, %v519
    %v619 = vpack.c.b16 %v523, %v520
    %v620 = vpack.c.b16 %v524, %v521
    %v621 = vpack.c.b16 %v528, %v525
    %v622 = vpack.c.b16 %v529, %v526
    %v623 = vpack.c.b16 %v530, %v527
    %v624 = vpack.c.b16 %v534, %v531
    %v625 = vpack.c.b16 %v535, %v532
    %v626 = vpack.c.b16 %v536, %v533
    %v627 = vpack.c.b16 %v540, %v537
    %v628 = vpack.c.b16 %v541, %v538
    %v629 = vpack.c.b16 %v542, %v539
    %v630 = vpack.c.b16 %v546, %v543
    %v631 = vpack.c.b16 %v547, %v544
    %v632 = vpack.c.b16 %v548, %v545
    %v633 = vpack.c.b16 %v552, %v549
    %v634 = vpack.c.b16 %v553, %v550
    %v635 = vpack.c.b16 %v554, %v551
    %v636 = vpack.c.b16 %v558, %v555
    %v637 = vpack.c.b16 %v559, %v556
    %v638 = vpack.c.b16 %v560, %v557
    %v639 = vpack.c.b16 %v564, %v561
    %v640 = vpack.c.b16 %v565, %v562
    %v641 = vpack.c.b16 %v566, %v563
    %vm717 = vcmask 130048
    %v719 = vsel %vm717, %v216, 0
    %721 = vmatpush.bf16.msra.mxu0 %v588
    %722 = vmatpush.bf16.msra.mxu0 %v585
    %723 = vmatpush.bf16.msra.mxu0 %v582
    %724 = vmatpush.bf16.msra.mxu0 %v579
    %725 = vmatpush.bf16.msra.mxu0 %v576
    %726 = vmatpush.bf16.msra.mxu0 %v573
    %727 = vmatpush.bf16.msra.mxu0 %v570
    %728 = vmatpush.bf16.msra.mxu0 %v567
    %729 = vmatmul.bf16.gmra.mxu0 %v213
    %v730 = vpop.f32.mrf.mxu0
    %v731 = vadd.f32 %v180, %v730
    %v732 = vpop.f32.mrf.mxu0
    %733 = vdwg.mxu0
    %734 = vmatpush.bf16.msra.mxu0 %v612
    %735 = vmatpush.bf16.msra.mxu0 %v609
    %736 = vmatpush.bf16.msra.mxu0 %v606
    %737 = vmatpush.bf16.msra.mxu0 %v603
    %738 = vmatpush.bf16.msra.mxu0 %v600
    %739 = vmatpush.bf16.msra.mxu0 %v597
    %740 = vmatpush.bf16.msra.mxu0 %v594
    %741 = vmatpush.bf16.msra.mxu0 %v591
    %742 = vmatmul.bf16.gmra.mxu0 %v214
    %v743 = vpop.f32.mrf.mxu0
    %v744 = vadd.f32 %v731, %v743
    %v745 = vpop.f32.mrf.mxu0
    %746 = vdwg.mxu0
    %747 = vmatpush.bf16.msra.mxu0 %v636
    %748 = vmatpush.bf16.msra.mxu0 %v633
    %749 = vmatpush.bf16.msra.mxu0 %v630
    %750 = vmatpush.bf16.msra.mxu0 %v627
    %751 = vmatpush.bf16.msra.mxu0 %v624
    %752 = vmatpush.bf16.msra.mxu0 %v621
    %753 = vmatpush.bf16.msra.mxu0 %v618
    %754 = vmatpush.bf16.msra.mxu0 %v615
    %755 = vmatmul.bf16.gmra.mxu0 %v215
    %v756 = vpop.f32.mrf.mxu0
    %v757 = vadd.f32 %v744, %v756
    %v758 = vpop.f32.mrf.mxu0
    %759 = vdwg.mxu0
    %760 = vmatpush.bf16.msra.mxu0 0
    %761 = vmatpush.bf16.msra.mxu0 0
    %762 = vmatpush.bf16.msra.mxu0 0
    %763 = vmatpush.bf16.msra.mxu0 0
    %764 = vmatpush.bf16.msra.mxu0 0
    %765 = vmatpush.bf16.msra.mxu0 0
    %766 = vmatpush.bf16.msra.mxu0 0
    %767 = vmatpush.bf16.msra.mxu0 %v639
    %768 = vmatmul.bf16.gmra.mxu0 %v719
    %v769 = vpop.f32.mrf.mxu0
    %v770 = vadd.f32 %v757, %v769
    %v771 = vpop.f32.mrf.mxu0
    %772 = vdwg.mxu0
    %773 = vmatpush.bf16.msra.mxu0 %v589
    %774 = vmatpush.bf16.msra.mxu0 %v586
    %775 = vmatpush.bf16.msra.mxu0 %v583
    %776 = vmatpush.bf16.msra.mxu0 %v580
    %777 = vmatpush.bf16.msra.mxu0 %v577
    %778 = vmatpush.bf16.msra.mxu0 %v574
    %779 = vmatpush.bf16.msra.mxu0 %v571
    %780 = vmatpush.bf16.msra.mxu0 %v568
    %781 = vmatmul.bf16.gmra.mxu0 %v213
    %v782 = vpop.f32.mrf.mxu0
    %v783 = vadd.f32 %v193, %v782
    %v784 = vpop.f32.mrf.mxu0
    %785 = vdwg.mxu0
    %786 = vmatpush.bf16.msra.mxu0 %v613
    %787 = vmatpush.bf16.msra.mxu0 %v610
    %788 = vmatpush.bf16.msra.mxu0 %v607
    %789 = vmatpush.bf16.msra.mxu0 %v604
    %790 = vmatpush.bf16.msra.mxu0 %v601
    %791 = vmatpush.bf16.msra.mxu0 %v598
    %792 = vmatpush.bf16.msra.mxu0 %v595
    %793 = vmatpush.bf16.msra.mxu0 %v592
    %794 = vmatmul.bf16.gmra.mxu0 %v214
    %v795 = vpop.f32.mrf.mxu0
    %v796 = vadd.f32 %v783, %v795
    %v797 = vpop.f32.mrf.mxu0
    %798 = vdwg.mxu0
    %799 = vmatpush.bf16.msra.mxu0 %v637
    %800 = vmatpush.bf16.msra.mxu0 %v634
    %801 = vmatpush.bf16.msra.mxu0 %v631
    %802 = vmatpush.bf16.msra.mxu0 %v628
    %803 = vmatpush.bf16.msra.mxu0 %v625
    %804 = vmatpush.bf16.msra.mxu0 %v622
    %805 = vmatpush.bf16.msra.mxu0 %v619
    %806 = vmatpush.bf16.msra.mxu0 %v616
    %807 = vmatmul.bf16.gmra.mxu0 %v215
    %v808 = vpop.f32.mrf.mxu0
    %v809 = vadd.f32 %v796, %v808
    %v810 = vpop.f32.mrf.mxu0
    %811 = vdwg.mxu0
    %812 = vmatpush.bf16.msra.mxu0 0
    %813 = vmatpush.bf16.msra.mxu0 0
    %814 = vmatpush.bf16.msra.mxu0 0
    %815 = vmatpush.bf16.msra.mxu0 0
    %816 = vmatpush.bf16.msra.mxu0 0
    %817 = vmatpush.bf16.msra.mxu0 0
    %818 = vmatpush.bf16.msra.mxu0 0
    %819 = vmatpush.bf16.msra.mxu0 %v640
    %820 = vmatmul.bf16.gmra.mxu0 %v719
    %v821 = vpop.f32.mrf.mxu0
    %v822 = vadd.f32 %v809, %v821
    %v823 = vpop.f32.mrf.mxu0
    %824 = vdwg.mxu0
    %825 = vmatpush.bf16.msra.mxu0 %v590
    %826 = vmatpush.bf16.msra.mxu0 %v587
    %827 = vmatpush.bf16.msra.mxu0 %v584
    %828 = vmatpush.bf16.msra.mxu0 %v581
    %829 = vmatpush.bf16.msra.mxu0 %v578
    %830 = vmatpush.bf16.msra.mxu0 %v575
    %831 = vmatpush.bf16.msra.mxu0 %v572
    %832 = vmatpush.bf16.msra.mxu0 %v569
    %833 = vmatmul.bf16.gmra.mxu0 %v213
    %v834 = vpop.f32.mrf.mxu0
    %v835 = vadd.f32 %v206, %v834
    %v836 = vpop.f32.mrf.mxu0
    %837 = vdwg.mxu0
    %838 = vmatpush.bf16.msra.mxu0 %v614
    %839 = vmatpush.bf16.msra.mxu0 %v611
    %840 = vmatpush.bf16.msra.mxu0 %v608
    %841 = vmatpush.bf16.msra.mxu0 %v605
    %842 = vmatpush.bf16.msra.mxu0 %v602
    %843 = vmatpush.bf16.msra.mxu0 %v599
    %844 = vmatpush.bf16.msra.mxu0 %v596
    %845 = vmatpush.bf16.msra.mxu0 %v593
    %846 = vmatmul.bf16.gmra.mxu0 %v214
    %v847 = vpop.f32.mrf.mxu0
    %v848 = vadd.f32 %v835, %v847
    %v849 = vpop.f32.mrf.mxu0
    %850 = vdwg.mxu0
    %851 = vmatpush.bf16.msra.mxu0 %v638
    %852 = vmatpush.bf16.msra.mxu0 %v635
    %853 = vmatpush.bf16.msra.mxu0 %v632
    %854 = vmatpush.bf16.msra.mxu0 %v629
    %855 = vmatpush.bf16.msra.mxu0 %v626
    %856 = vmatpush.bf16.msra.mxu0 %v623
    %857 = vmatpush.bf16.msra.mxu0 %v620
    %858 = vmatpush.bf16.msra.mxu0 %v617
    %859 = vmatmul.bf16.gmra.mxu0 %v215
    %v860 = vpop.f32.mrf.mxu0
    %v861 = vadd.f32 %v848, %v860
    %v862 = vpop.f32.mrf.mxu0
    %863 = vdwg.mxu0
    %864 = vmatpush.bf16.msra.mxu0 0
    %865 = vmatpush.bf16.msra.mxu0 0
    %866 = vmatpush.bf16.msra.mxu0 0
    %867 = vmatpush.bf16.msra.mxu0 0
    %868 = vmatpush.bf16.msra.mxu0 0
    %869 = vmatpush.bf16.msra.mxu0 0
    %870 = vmatpush.bf16.msra.mxu0 0
    %871 = vmatpush.bf16.msra.mxu0 %v641
    %872 = vmatmul.bf16.gmra.mxu0 %v719
    %v873 = vpop.f32.mrf.mxu0
    %v874 = vadd.f32 %v861, %v873
    %v875 = vpop.f32.mrf.mxu0
    %876 = vdwg.mxu0
    %v877 = vmax.f32 %v770, 0.0
    %v878 = vmax.f32 %v822, 0.0
    %v879 = vmax.f32 %v874, 0.0
    %v880 = vld [vmem:[%s3] sm:$0x7]
    %v881 = vunpack.c.l.bf16 %v880
    %v883 = vperm.slane %v881, 0
    %v884 = vperm.slane %v881, 2
    %v885 = vperm.slane %v881, 4
    %v889 = vperm.slane %v883, 0
    %v890 = vperm.slane %v884, 0
    %v891 = vperm.slane %v885, 0
    %v892 = vmul.f32 %v877, %v889
    %v893 = vmul.f32 %v878, %v890
    %v894 = vmul.f32 %v879, %v891
    %v895 = vadd.f32 %v892, %v893
    %vm896 = vcmask 359424
    %v897 = vsel %vm896, %v894, 0.0
    %v898 = vadd.f32 %v895, %v897
    %899 = vadd.xlane.f32.xlu0 %v898
    %v900 = vpop.xlane.xlu0 %899
    %s901 = sld [smem:[#allocation2]]
    %v902 = vstv %s901
    %v903 = vadd.f32 %v900, %v902
    %vm904 = vcmask 7168
    %905 = vst.msk [vmem:[%s5] sm:$0xff] %vm904, %v903
    // Predicated region
    $region34: #{tpu_custom_call.1} parent=1 // pred_check
      _
    $region35: #{tpu_custom_call.1} parent=1 // pred_check_branch
      %907 = sbr.rel (0) target = $region37
    $region36: #{tpu_custom_call.1} parent=1 // pred_region
      _
    $region37: #{tpu_custom_call.1} parent=1 // pred_fallthru
      _
    // Predicated region
    $region38: #{tpu_custom_call.1} parent=1 // pred_check
      _
    $region39: #{tpu_custom_call.1} parent=1 // pred_check_branch
      %909 = sbr.rel (0) target = $region41
    $region40: #{tpu_custom_call.1} parent=1 // pred_region
      _
    $region41: #{tpu_custom_call.1} parent=1 // pred_fallthru
      _
    %910 = vsyncpa [#allocation4], 1
    %911 = vsyncpa [#allocation6], 1

</llo_original>
